<compile_context>
chip_gen: v7x
topology: tpu7x:2x2x1
jax: 0.10.0
libtpu: 0.0.40
codegen_flags: <defaults>
</compile_context>

<pallas_src>
import functools

import numpy as np
import jax
import jax.numpy as jnp
from jax.experimental import pallas as pl
from jax.experimental.pallas import tpu as pltpu

LP = 128        # lane width of one packed row (keep 128 for v5e; 256 is a minor win on v6e/v7x)
MAX_TM = 2048   # max packed-row tile


def _round_up(a, b):
    return ((a + b - 1) // b) * b


# ----------------------------------------------------------------------------
# Pallas kernel: the entire U-Net forward, pre-composed into one affine map.
#   x_ref: [TM, LP] bf16  (P packed time-series per 128-lane row)
#   a_ref: [LP, LP] f32   (block-diagonal composed operator, VMEM-resident)
#   c_ref: [1,  LP] f32   (tiled composed bias, VMEM-resident)
#   o_ref: [TM, LP] bf16
# ----------------------------------------------------------------------------
def unet_affine_kernel(x_ref, a_ref, c_ref, o_ref):
    acc = jnp.dot(x_ref[...].astype(jnp.float32), a_ref[...],
                  preferred_element_type=jnp.float32)
    o_ref[...] = (acc + c_ref[...]).astype(o_ref.dtype)


@functools.partial(jax.jit, static_argnames=("B", "C", "L"))
def run_unet_pallas(x, A_pad, c_pad, B, C, L):
    """x: [B, seq_len, enc_in] (PyTorch layout). Returns [B, pred_len, enc_in]."""
    P = LP // L                        # packed series per 128-lane row
    R0 = B * C                         # real (batch, channel) rows
    R_rows_real = -(-R0 // P)          # packed rows actually carrying data
    R8 = _round_up(R_rows_real, 8)     # sublane-align

    TM = min(MAX_TM, R8)
    if R8 > 8 and R8 // TM < 2:        # give v7x's two TensorCores >= 2 grid steps
        TM = max(8, _round_up((R8 + 1) // 2, 8))
    R_rows = _round_up(R8, TM)
    grid_rows = R_rows // TM

    # [B, L, C] -> permute(0,2,1) -> [B*C, L] in bf16, then pack P rows per 128 lanes.
    xp = jnp.transpose(x, (0, 2, 1)).reshape(R0, L).astype(jnp.bfloat16)
    pad_rows = R_rows * P - R0
    if pad_rows:
        xp = jnp.pad(xp, ((0, pad_rows), (0, 0)))
    x2d = xp.reshape(R_rows, P * L)
    if P * L < LP:
        x2d = jnp.pad(x2d, ((0, 0), (0, LP - P * L)))

    out2d = pl.pallas_call(
        unet_affine_kernel,
        out_shape=jax.ShapeDtypeStruct((R_rows, LP), jnp.bfloat16),
        grid=(grid_rows,),
        in_specs=[
            pl.BlockSpec((TM, LP), lambda i: (i, 0)),   # packed activations (pipelined)
            pl.BlockSpec((LP, LP), lambda i: (0, 0)),   # composed operator, VMEM-resident
            pl.BlockSpec((1, LP), lambda i: (0, 0)),    # composed bias,    VMEM-resident
        ],
        out_specs=pl.BlockSpec((TM, LP), lambda i: (i, 0)),
        compiler_params=pltpu.CompilerParams(
            dimension_semantics=("parallel",)),          # shard rows across TCs (v7x)
    )(x2d, A_pad, c_pad)

    out = out2d[:, :P * L].reshape(R_rows * P, L)[:R0].reshape(B, C, L)
    return jnp.transpose(out, (0, 2, 1)).astype(x.dtype)


# ----------------------------------------------------------------------------
# Host-side affine composition of the whole model (done once per weight set).
# ----------------------------------------------------------------------------
def pool_mat_np(l):
    """AvgPool1d(k=3, s=2, p=1, count_include_pad=True) as an [l, l//2] right-matrix."""
    m = np.zeros((l, l // 2), np.float32)
    for j in range(l // 2):
        for k in (2 * j - 1, 2 * j, 2 * j + 1):
            if 0 <= k < l:
                m[k, j] = 1.0 / 3.0
    return m


def up_mat_np(l):
    """nn.Upsample(scale_factor=2, mode='nearest') as an [l, 2l] right-matrix."""
    m = np.zeros((l, 2 * l), np.float32)
    for k in range(2 * l):
        m[k // 2, k] = 1.0
    return m


def compose_affine(L, lin_params):
    """Fold the full U-Net into (A, c) with out_row = x_row @ A + c.  A: [L,L], c: [L]."""
    (W1, b1), (W2, b2), (W3, b3), (W4, b4), (Wu3, bu3), (Wu2, bu2), (Wu1, bu1) = lin_params

    def lin(A, c, W, b):          # y = v @ W^T + b  with  v = x @ A + c
        return A @ W.T, c @ W.T + b

    def mat(A, c, M):             # y = v @ M
        return A @ M, c @ M

    A, c = lin(np.eye(L, dtype=np.float32), np.zeros((L,), np.float32), W1, b1)   # e1
    A_e1, c_e1 = A, c
    A, c = mat(A, c, pool_mat_np(L))
    A, c = lin(A, c, W2, b2)                                                      # e2
    A_e2, c_e2 = A, c
    A, c = mat(A, c, pool_mat_np(L // 2))
    A, c = lin(A, c, W3, b3)                                                      # e3
    A_e3, c_e3 = A, c
    A, c = mat(A, c, pool_mat_np(L // 4))
    A, c = lin(A, c, W4, b4)                                                      # e4
    A, c = mat(A, c, up_mat_np(L // 8))                                           # Up4
    A, c = A + A_e3, c + c_e3                                                     # + e3
    A, c = lin(A, c, Wu3, bu3)                                                    # up_block3
    A, c = mat(A, c, up_mat_np(L // 4))                                           # Up3
    A, c = A + A_e2, c + c_e2                                                     # + e2
    A, c = lin(A, c, Wu2, bu2)                                                    # up_block2
    A, c = mat(A, c, up_mat_np(L // 2))                                           # Up2
    A, c = A + A_e1, c + c_e1                                                     # + e1
    A, c = lin(A, c, Wu1, bu1)                                                    # up_block1
    return A.astype(np.float32), c.astype(np.float32)


def pad_affine(A, c, L):
    """Block-diagonal lane packing: P = LP//L copies of the [L,L] composed A on the diagonal
    of a [LP,LP] f32 matrix; the bias is tiled across the packed lanes."""
    P = LP // L
    A_pad = np.zeros((LP, LP), np.float32)
    c_pad = np.zeros((1, LP), np.float32)
    for p in range(P):
        A_pad[p * L:(p + 1) * L, p * L:(p + 1) * L] = A
        c_pad[0, p * L:(p + 1) * L] = c
    return jnp.asarray(A_pad), jnp.asarray(c_pad)


# ----------------------------------------------------------------------------
# Parameter construction (nn.Linear-style init) + pure-JAX step-by-step reference
# ----------------------------------------------------------------------------
def torch_linear_init(key, fan_in, fan_out):
    kw, kb = jax.random.split(key)
    bound = 1.0 / np.sqrt(fan_in)
    w = jax.random.uniform(kw, (fan_out, fan_in), jnp.float32, -bound, bound)
    b = jax.random.uniform(kb, (fan_out,), jnp.float32, -bound, bound)
    return np.asarray(w), np.asarray(b)


def ref_forward(x, lin_params):
    (W1, b1), (W2, b2), (W3, b3), (W4, b4), (Wu3, bu3), (Wu2, bu2), (Wu1, bu1) = lin_params

    def lin(v, w, b):  # torch Linear: y = x W^T + b, w: [out, in]
        return jnp.einsum('bcl,ol->bco', v, w) + b

    def avgpool(v):
        vp = jnp.pad(v, ((0, 0), (0, 0), (1, 1)))
        Lc = v.shape[-1]
        j = np.arange(Lc // 2) * 2
        return (vp[..., j] + vp[..., j + 1] + vp[..., j + 2]) / 3.0

    def up(v):
        return jnp.repeat(v, 2, axis=-1)

    xp = jnp.transpose(x, (0, 2, 1))
    e1 = lin(xp, W1, b1)
    e2 = lin(avgpool(e1), W2, b2)
    e3 = lin(avgpool(e2), W3, b3)
    e4 = lin(avgpool(e3), W4, b4)
    d4 = lin(up(e4) + e3, Wu3, bu3)
    d3 = lin(up(d4) + e2, Wu2, bu2)
    out = lin(up(d3) + e1, Wu1, bu1)
    return jnp.transpose(out, (0, 2, 1))


if __name__ == "__main__":
    # configs: enc_in=4, seq_len=pred_len=16, individual=False
    B, C, L = 2, 4, 16
    assert L % 8 == 0 and L <= LP

    key = jax.random.PRNGKey(0)
    k_x, k1, k2, k3, k4, ku3, ku2, ku1 = jax.random.split(key, 8)

    x = jax.random.normal(k_x, (B, L, C), jnp.float32)   # [batch, seq_len, enc_in]

    # block_model linears (torch convention weight [out, in]).
    # NOTE: block_model also defines LayerNorm/ReLU but never uses them in forward().
    lin_params = [
        torch_linear_init(k1, L, L),             # down_block1: L   -> L
        torch_linear_init(k2, L // 2, L // 2),   # down_block2
        torch_linear_init(k3, L // 4, L // 4),   # down_block3
        torch_linear_init(k4, L // 8, L // 8),   # down_block4
        torch_linear_init(ku3, L // 4, L // 4),  # up_block3
        torch_linear_init(ku2, L // 2, L // 2),  # up_block2
        torch_linear_init(ku1, L, L),            # up_block1
    ]

    # Fold the entire U-Net (linears + pools + upsamples + skips + biases) into one affine map,
    # then lane-pack it block-diagonally.
    A, c = compose_affine(L, lin_params)
    A_pad, c_pad = pad_affine(A, c, L)

    out = run_unet_pallas(x, A_pad, c_pad, B, C, L)
    out = jax.block_until_ready(out)

    expected = ref_forward(x, lin_params)
    np.testing.assert_allclose(np.asarray(out), np.asarray(expected), rtol=3e-2, atol=3e-2)
    assert out.shape == (B, L, C)

    print("KERNEL_OK")
</pallas_src>

<mosaic_0001>
module attributes {stable_mosaic.version = 11 : i64} {
  func.func @unet_affine_kernel(%arg0: i32, %arg1: memref<8x128xbf16, #tpu.memory_space<vmem>>, %arg2: memref<128x128xf32, #tpu.memory_space<vmem>>, %arg3: memref<1x128xf32, #tpu.memory_space<vmem>>, %arg4: memref<8x128xbf16, #tpu.memory_space<vmem>>) attributes {dimension_semantics = [#tpu.dimension_semantics<parallel>], iteration_bounds = array<i64: 1>, scalar_prefetch = 0 : i64, scratch_operands = 0 : i64, tpu.core_type = #tpu.core_type<tc>, window_params = [{transform_indices = @transform_0, window_bounds = array<i64: 8, 128>}, {pipeline_mode = #tpu.pipeline_mode<synchronous>, transform_indices = @transform_1, window_bounds = array<i64: 128, 128>}, {pipeline_mode = #tpu.pipeline_mode<synchronous>, transform_indices = @transform_2, window_bounds = array<i64: 1, 128>}, {transform_indices = @transform_3, window_bounds = array<i64: 8, 128>}]} {
    %c0 = arith.constant 0 : index
    %c0_0 = arith.constant 0 : index
    %0 = vector.load %arg1[%c0, %c0_0] : memref<8x128xbf16, #tpu.memory_space<vmem>>, vector<8x128xbf16>
    %1 = arith.extf %0 : vector<8x128xbf16> to vector<8x128xf32>
    %c0_1 = arith.constant 0 : index
    %c0_2 = arith.constant 0 : index
    %2 = vector.load %arg2[%c0_1, %c0_2] : memref<128x128xf32, #tpu.memory_space<vmem>>, vector<128x128xf32>
    %cst = arith.constant dense<0.000000e+00> : vector<8x128xf32>
    %3 = tpu.matmul %1, %2, %cst {dimension_numbers = #tpu.dot_dimension_numbers<[1], [0], [0], [1], [0, 0, 1, 1], [], []>} : vector<8x128xf32>, vector<128x128xf32>, vector<8x128xf32> -> vector<8x128xf32>
    %c0_3 = arith.constant 0 : index
    %c0_4 = arith.constant 0 : index
    %4 = vector.load %arg3[%c0_3, %c0_4] : memref<1x128xf32, #tpu.memory_space<vmem>>, vector<1x128xf32>
    %5 = vector.broadcast %4 : vector<1x128xf32> to vector<8x128xf32>
    %6 = arith.addf %3, %5 : vector<8x128xf32>
    %7 = arith.truncf %6 : vector<8x128xf32> to vector<8x128xbf16>
    %c0_5 = arith.constant 0 : index
    %c0_6 = arith.constant 0 : index
    %8 = vector.load %arg4[%c0_5, %c0_6] : memref<8x128xbf16, #tpu.memory_space<vmem>>, vector<8x128xbf16>
    tpu.vector_store %arg4[%c0_5, %c0_6], %7 {strides = array<i32>} : memref<8x128xbf16, #tpu.memory_space<vmem>>, vector<8x128xbf16>,
    return
  }
  func.func @transform_0(%arg0: i32) -> (i32, i32) {
    %c0_i32 = arith.constant 0 : i32
    %c0_i32_0 = arith.constant 0 : i32
    return %arg0, %c0_i32 : i32, i32
  }
  func.func @transform_1(%arg0: i32) -> (i32, i32) {
    %c0_i32 = arith.constant 0 : i32
    %c0_i32_0 = arith.constant 0 : i32
    %c0_i32_1 = arith.constant 0 : i32
    return %c0_i32, %c0_i32_0 : i32, i32
  }
  func.func @transform_2(%arg0: i32) -> (i32, i32) {
    %c0_i32 = arith.constant 0 : i32
    %c0_i32_0 = arith.constant 0 : i32
    %c0_i32_1 = arith.constant 0 : i32
    return %c0_i32, %c0_i32_0 : i32, i32
  }
  func.func @transform_3(%arg0: i32) -> (i32, i32) {
    %c0_i32 = arith.constant 0 : i32
    %c0_i32_0 = arith.constant 0 : i32
    return %arg0, %c0_i32 : i32, i32
  }
}

</mosaic_0001>

<llo_original>
// kernel: run_unet_pallas.1
$region0: #{run_unet_pallas.1}
  #allocation0 [shape = 'u32[]', space=smem, size = 0x4, offset = 0x4, fixed_abs, tag = 'smem constant byte address 0x4 - core index']
  #allocation1 [shape = 'u32[144,128]{1,0:T(1,128)}', space=vmem, size = 0x12000, scoped, tag = 'internal scratch']
  %s0 = inlined_call_operand.vmem [shape: bf16[8,128], index: 0, kind: input, shape index: {}]
  %s1 = inlined_call_operand.hbm [shape: f32[128,128], index: 1, kind: input, shape index: {}]
  %s2 = inlined_call_operand.vmem [shape: f32[1,128], index: 2, kind: input, shape index: {}]
  %s3 = inlined_call_operand.vmem [shape: bf16[8,128], index: 3, kind: output, shape index: {}]
  %s4 = sld [smem:[#allocation0]]
  $region26: #{run_unet_pallas.1} parent=0
    _
  %s6 = ssub.s32 1, %s4
  %s7 = scalar_select 0, %s6, %s4
  $region1: #{run_unet_pallas.1} parent=0
    #allocation2 [shape = 'u8[65536]{0}', space=vmem, size = 0x10000, scoped, tag = 'input window, operand 1, single buffered']
    #allocation3 [shape = 's32[1]{0}', space=sflag, size = 0x4, scoped, tag = 'scoped memory for run_unet_pallas.1']
    %8 = vsyncpa [#allocation3], 0
    // Predicated region
    $region2: #{run_unet_pallas.1} parent=1 // pred_check
      _
    $region3: #{run_unet_pallas.1} parent=1 // pred_check_branch
      %10 = sbr.rel (0) target = $region5
    $region4: #{run_unet_pallas.1} parent=1 // pred_region
      _
    $region5: #{run_unet_pallas.1} parent=1 // pred_fallthru
      _
    // Predicated region
    $region6: #{run_unet_pallas.1} parent=1 // pred_check
      _
    $region7: #{run_unet_pallas.1} parent=1 // pred_check_branch
      %12 = sbr.rel (0) target = $region9
    $region8: #{run_unet_pallas.1} parent=1 // pred_region
      %s14 = ssub.s32 2048, 2048
      %15 = vsyncadd [#allocation3], %s14
      %s16 = sshll.u32 [#allocation2], 4
      %s17 = int_to_ptr.vmem [resolvable:$true] %s16
      %22 = dma.hbm_to_vmem [thread:$0]  %s1, 2048, %s17, [#allocation3], 128, 128, 8
    $region9: #{run_unet_pallas.1} parent=1 // pred_fallthru
      _
    // Predicated region
    $region10: #{run_unet_pallas.1} parent=1 // pred_check
      _
    $region11: #{run_unet_pallas.1} parent=1 // pred_check_branch
      %24 = sbr.rel (0) target = $region13
    $region12: #{run_unet_pallas.1} parent=1 // pred_region
      _
    $region13: #{run_unet_pallas.1} parent=1 // pred_fallthru
      _
    // Predicated region
    $region14: #{run_unet_pallas.1} parent=1 // pred_check
      _
    $region15: #{run_unet_pallas.1} parent=1 // pred_check_branch
      %26 = sbr.rel (0) target = $region17
    $region16: #{run_unet_pallas.1} parent=1 // pred_region
      %27 = dma.done [#allocation3], 2048
    $region17: #{run_unet_pallas.1} parent=1 // pred_fallthru
      _
    %v28 = vld [vmem:[%s0] sm:$0xf]
    %v29 = vunpack.c.l.bf16 %v28
    %v30 = vld [vmem:[#allocation2] sm:$0xff]
    %v31 = vld [vmem:[#allocation2 + $0x8] sm:$0xff]
    %v32 = vld [vmem:[#allocation2 + $0x10] sm:$0xff]
    %v33 = vld [vmem:[#allocation2 + $0x18] sm:$0xff]
    %v34 = vld [vmem:[#allocation2 + $0x20] sm:$0xff]
    %v35 = vld [vmem:[#allocation2 + $0x28] sm:$0xff]
    %v36 = vld [vmem:[#allocation2 + $0x30] sm:$0xff]
    %v37 = vld [vmem:[#allocation2 + $0x38] sm:$0xff]
    %v38 = vld [vmem:[#allocation2 + $0x40] sm:$0xff]
    %v39 = vld [vmem:[#allocation2 + $0x48] sm:$0xff]
    %v40 = vld [vmem:[#allocation2 + $0x50] sm:$0xff]
    %v41 = vld [vmem:[#allocation2 + $0x58] sm:$0xff]
    %v42 = vld [vmem:[#allocation2 + $0x60] sm:$0xff]
    %v43 = vld [vmem:[#allocation2 + $0x68] sm:$0xff]
    %v44 = vld [vmem:[#allocation2 + $0x70] sm:$0xff]
    %v45 = vld [vmem:[#allocation2 + $0x78] sm:$0xff]
    %v46 = vld [vmem:[%s2] sm:$0x1]
    %v48 = vlaneseq
    %v49 = vshrl.u32 %v48, 7
    %v50 = vsub.s32 0, %v49
    %v51 = vrot.slane %v46, %v50
    %53 = vmatprep.subr.mxu0 0.0
    %54 = vmatpush1.msra.mxu0 %v30
    %55 = vmatprep.subr.mxu0 0.0
    %56 = vmatpush1.msra.mxu0 %v31
    %57 = vmatprep.subr.mxu0 0.0
    %58 = vmatpush1.msra.mxu0 %v32
    %59 = vmatprep.subr.mxu0 0.0
    %60 = vmatpush1.msra.mxu0 %v33
    %61 = vmatprep.subr.mxu0 0.0
    %62 = vmatpush1.msra.mxu0 %v34
    %63 = vmatprep.subr.mxu0 0.0
    %64 = vmatpush1.msra.mxu0 %v35
    %65 = vmatprep.subr.mxu0 0.0
    %66 = vmatpush1.msra.mxu0 %v36
    %67 = vmatprep.subr.mxu0 0.0
    %68 = vmatpush1.msra.mxu0 %v37
    %69 = vmatprep.subr.mxu0 0.0
    %70 = vmatpush1.msra.mxu0 %v38
    %71 = vmatprep.subr.mxu0 0.0
    %72 = vmatpush1.msra.mxu0 %v39
    %73 = vmatprep.subr.mxu0 0.0
    %74 = vmatpush1.msra.mxu0 %v40
    %75 = vmatprep.subr.mxu0 0.0
    %76 = vmatpush1.msra.mxu0 %v41
    %77 = vmatprep.subr.mxu0 0.0
    %78 = vmatpush1.msra.mxu0 %v42
    %79 = vmatprep.subr.mxu0 0.0
    %80 = vmatpush1.msra.mxu0 %v43
    %81 = vmatprep.subr.mxu0 0.0
    %82 = vmatpush1.msra.mxu0 %v44
    %83 = vmatprep.subr.mxu0 0.0
    %84 = vmatpush1.msra.mxu0 %v45
    %85 = vmatprep.subr.mxu0 0.0
    %86 = vmatpush1.msra.mxu0 0.0
    %87 = vmatprep.subr.mxu0 0.0
    %88 = vmatpush1.msra.mxu0 0.0
    %89 = vmatprep.subr.mxu0 0.0
    %90 = vmatpush1.msra.mxu0 0.0
    %91 = vmatprep.subr.mxu0 0.0
    %92 = vmatpush1.msra.mxu0 0.0
    %93 = vmatprep.subr.mxu0 0.0
    %94 = vmatpush1.msra.mxu0 0.0
    %95 = vmatprep.subr.mxu0 0.0
    %96 = vmatpush1.msra.mxu0 0.0
    %97 = vmatprep.subr.mxu0 0.0
    %98 = vmatpush1.msra.mxu0 0.0
    %99 = vmatprep.subr.mxu0 0.0
    %100 = vmatpush1.msra.mxu0 0.0
    %101 = vmatprep.subr.mxu0 0.0
    %102 = vmatpush1.msra.mxu0 0.0
    %103 = vmatprep.subr.mxu0 0.0
    %104 = vmatpush1.msra.mxu0 0.0
    %105 = vmatprep.subr.mxu0 0.0
    %106 = vmatpush1.msra.mxu0 0.0
    %107 = vmatprep.subr.mxu0 0.0
    %108 = vmatpush1.msra.mxu0 0.0
    %109 = vmatprep.subr.mxu0 0.0
    %110 = vmatpush1.msra.mxu0 0.0
    %111 = vmatprep.subr.mxu0 0.0
    %112 = vmatpush1.msra.mxu0 0.0
    %113 = vmatprep.subr.mxu0 0.0
    %114 = vmatpush1.msra.mxu0 0.0
    %115 = vmatprep.subr.mxu0 0.0
    %116 = vmatpush1.msra.mxu0 0.0
    %117 = vmatprep.mubr.f32.mxu0 0.0
    %118 = vmatmul.mubr.f32.gmra.mrb[0].mxu0 %v29
    %v119 = vpop.f32.mrb[0].mxu0
    %v120 = vadd.f32 %v51, %v119
    %v121 = vpop.f32.mrb[0].mxu0
    %122 = vdwg.mxu0
    %v123 = vpack.c.bf16 %v120, %v120
    %124 = vst [vmem:[%s3] sm:$0xf] %v123
    // Predicated region
    $region18: #{run_unet_pallas.1} parent=1 // pred_check
      _
    $region19: #{run_unet_pallas.1} parent=1 // pred_check_branch
      %126 = sbr.rel (0) target = $region21
    $region20: #{run_unet_pallas.1} parent=1 // pred_region
      _
    $region21: #{run_unet_pallas.1} parent=1 // pred_fallthru
      _
    // Predicated region
    $region22: #{run_unet_pallas.1} parent=1 // pred_check
      _
    $region23: #{run_unet_pallas.1} parent=1 // pred_check_branch
      %128 = sbr.rel (0) target = $region25
    $region24: #{run_unet_pallas.1} parent=1 // pred_region
      _
    $region25: #{run_unet_pallas.1} parent=1 // pred_fallthru
      _
    %129 = vsyncpa [#allocation3], 1

</llo_original>
